<compile_context>
chip_gen: v5e
topology: v5e:2x2
jax: 0.10.0
libtpu: 0.0.40
codegen_flags: <defaults>
</compile_context>

<pallas_src>
import functools

import jax
import jax.numpy as jnp
from jax.experimental import pallas as pl
from jax.experimental.pallas import tpu as pltpu


def _round_up(x, m):
    return ((x + m - 1) // m) * m


def _detect_vmem_budget():
    """~70% of physical VMEM per core; conservative 64 MiB fallback."""
    try:
        cap = getattr(pltpu.get_tpu_info(), "vmem_capacity_bytes", None)
        if not cap:
            cap = 64 * 1024 * 1024
    except Exception:
        cap = 64 * 1024 * 1024
    return int(0.70 * cap)


def _choose_hidden_tile(F, H, O_p, wbytes, budget):
    """Largest 128-aligned hidden tile whose W1/W2 blocks fit ~45% of budget."""
    H_128 = _round_up(H, 128)
    weight_budget = int(0.45 * 0.85 * budget)
    num_h = 1
    while True:
        tile_h = _round_up(-(-H_128 // num_h), 128)
        w_tot = 2 * (F * tile_h * wbytes + tile_h * O_p * wbytes
                     + tile_h * 4 + O_p * 4)            # double-buffered blocks
        if w_tot <= weight_budget or tile_h == 128:
            return tile_h, num_h * tile_h               # (tile, padded H)
        num_h += 1


def _choose_batch_tile(B, F, tile_h, O_p, xbytes, wbytes, obytes,
                       block_m, weight_bytes, budget, sub):
    usable = int(0.85 * budget) - weight_bytes
    per_row = (2 * F * xbytes        # double-buffered x tile
               + 2 * O_p * obytes    # double-buffered out tile
               + O_p * 4             # f32 accumulator
               + tile_h * 4          # f32 hidden activations
               + tile_h * wbytes)    # hidden cast for 2nd matmul
    tm_cap = max(sub, (usable // per_row) // sub * sub)
    tm = max(sub, min(block_m, _round_up(B, sub), tm_cap))
    tm = max(sub, (tm // sub) * sub)
    # Prefer an even batch-tile count so the "parallel" axis splits evenly
    # across v7x's two TensorCores (harmless on single-core v5e/v6e).
    nb = pl.cdiv(B, tm)
    if nb > 1 and nb % 2 == 1:
        tm_alt = _round_up(-(-B // (nb + 1)), sub)
        if tm_alt >= sub and pl.cdiv(B, tm_alt) % 2 == 0:
            tm = tm_alt
    return tm


def _mlp_kernel(x_ref, w1_ref, b1_ref, w2_ref, b2_ref, o_ref, acc_ref):
    k = pl.program_id(1)

    @pl.when(k == 0)
    def _init():
        acc_ref[...] = jnp.zeros_like(acc_ref)

    cdt = w1_ref.dtype                      # compute dtype (f32 or bf16)
    # hidden = relu(x @ W1 + b1); f32 accumulation on the MXU, f32 bias.
    h = jnp.dot(x_ref[...].astype(cdt), w1_ref[...],
                preferred_element_type=jnp.float32)
    h = jnp.maximum(h + b1_ref[...], 0.0)
    # Accumulate the partial h @ W2 contribution of this hidden tile.
    acc_ref[...] += jnp.dot(h.astype(cdt), w2_ref[...],
                            preferred_element_type=jnp.float32)

    @pl.when(k == pl.num_programs(1) - 1)
    def _finalize():
        o_ref[...] = (acc_ref[...] + b2_ref[...]).astype(o_ref.dtype)


@functools.partial(
    jax.jit,
    static_argnames=("tile_h", "n_output", "block_m", "vmem_limit",
                     "tiling_budget"))
def _mlp_forward(x, w1_p, b1_p, w2_p, b2_p, *, tile_h, n_output, block_m,
                 vmem_limit, tiling_budget):
    B, F = x.shape
    H_p = w1_p.shape[1]
    O_p = w2_p.shape[1]
    num_h = H_p // tile_h

    xbytes = jnp.dtype(x.dtype).itemsize
    wbytes = jnp.dtype(w1_p.dtype).itemsize
    obytes = xbytes
    sub = {4: 8, 2: 16, 1: 32}.get(xbytes, 8)   # sublane alignment per dtype

    weight_bytes = 2 * (F * tile_h * wbytes + tile_h * O_p * wbytes
                        + tile_h * 4 + O_p * 4)
    tm = _choose_batch_tile(B, F, tile_h, O_p, xbytes, wbytes, obytes,
                            block_m, weight_bytes, tiling_budget, sub)
    num_b = pl.cdiv(B, tm)
    grid = (num_b, num_h)

    # Advisory cost model (weights are re-read per batch tile only when the
    # hidden dim is tiled; otherwise they stay VMEM-resident).
    flops = 2 * B * (F * H_p + H_p * O_p)
    w_reads = num_b if num_h > 1 else 1
    bytes_accessed = (B * F * xbytes
                      + w_reads * (F * H_p + H_p * O_p) * wbytes
                      + (H_p + O_p) * 4
                      + B * O_p * obytes)

    out_p = pl.pallas_call(
        _mlp_kernel,
        out_shape=jax.ShapeDtypeStruct((B, O_p), x.dtype),
        grid_spec=pltpu.PrefetchScalarGridSpec(
            num_scalar_prefetch=0,
            grid=grid,
            in_specs=[
                pl.BlockSpec((tm, F), lambda i, k: (i, 0)),       # x (no pad/copy)
                pl.BlockSpec((F, tile_h), lambda i, k: (0, k)),   # W1 block
                pl.BlockSpec((1, tile_h), lambda i, k: (0, k)),   # b1 block (f32)
                pl.BlockSpec((tile_h, O_p), lambda i, k: (k, 0)), # W2 block
                pl.BlockSpec((1, O_p), lambda i, k: (0, 0)),      # b2 (f32, resident)
            ],
            out_specs=pl.BlockSpec((tm, O_p), lambda i, k: (i, 0)),
            scratch_shapes=[pltpu.VMEM((tm, O_p), jnp.float32)],
        ),
        compiler_params=pltpu.CompilerParams(
            dimension_semantics=("parallel", "arbitrary"),
            vmem_limit_bytes=int(vmem_limit),
        ),
        cost_estimate=pl.CostEstimate(
            flops=flops, transcendentals=0, bytes_accessed=bytes_accessed),
    )(x, w1_p, b1_p, w2_p, b2_p)

    # Strip only the output lane padding (no batch padding was introduced).
    return out_p if n_output == O_p else out_p[:, :n_output]


class PallasMLP:
    """Linear -> ReLU -> Linear; weights padded/cast ONCE at construction."""

    def __init__(self, w1, b1, w2, b2, *, compute_dtype=None,
                 tiling_budget_bytes=None):
        F, H = w1.shape
        H2, O = w2.shape
        assert H2 == H, "weight shapes inconsistent"
        self.n_output = O

        w_dtype = (jnp.dtype(compute_dtype) if compute_dtype is not None
                   else jnp.dtype(w1.dtype))
        self._vmem_limit = _detect_vmem_budget()
        self._budget = int(tiling_budget_bytes) if tiling_budget_bytes else \
            self._vmem_limit

        O_p = _round_up(O, 128)
        self.tile_h, H_p = _choose_hidden_tile(F, H, O_p, w_dtype.itemsize,
                                               self._budget)

        # One-time padding (zero pad is semantics-preserving: padded hidden
        # units have zero weights/bias -> relu(0)=0 -> contribute 0; padded
        # output columns are sliced off after the kernel).
        self.w1_p = jnp.zeros((F, H_p), w_dtype).at[:, :H].set(
            w1.astype(w_dtype))
        self.b1_p = jnp.zeros((1, H_p), jnp.float32).at[:, :H].set(
            jnp.reshape(b1, (1, H)).astype(jnp.float32))
        self.w2_p = jnp.zeros((H_p, O_p), w_dtype).at[:H, :O].set(
            w2.astype(w_dtype))
        self.b2_p = jnp.zeros((1, O_p), jnp.float32).at[:, :O].set(
            jnp.reshape(b2, (1, O)).astype(jnp.float32))

    def __call__(self, x, *, block_m=1024):
        return _mlp_forward(
            x, self.w1_p, self.b1_p, self.w2_p, self.b2_p,
            tile_h=self.tile_h, n_output=self.n_output, block_m=block_m,
            vmem_limit=self._vmem_limit, tiling_budget=self._budget)


def init_params(key, n_feature, n_hidden, n_output, dtype=jnp.float32):
    # Mimics torch.nn.Linear default init: U(-1/sqrt(fan_in), +1/sqrt(fan_in)).
    k1, k2, k3, k4 = jax.random.split(key, 4)
    bound1 = 1.0 / (n_feature ** 0.5)
    bound2 = 1.0 / (n_hidden ** 0.5)
    w1 = jax.random.uniform(k1, (n_feature, n_hidden), dtype, -bound1, bound1)
    b1 = jax.random.uniform(k2, (n_hidden,), dtype, -bound1, bound1)
    w2 = jax.random.uniform(k3, (n_hidden, n_output), dtype, -bound2, bound2)
    b2 = jax.random.uniform(k4, (n_output,), dtype, -bound2, bound2)
    return w1, b1, w2, b2


if __name__ == "__main__":
    n_feature, n_hidden, n_output = 16, 32, 4
    batch = 8

    key = jax.random.PRNGKey(0)
    kx, kp = jax.random.split(key)
    x = jax.random.normal(kx, (batch, n_feature), dtype=jnp.float32)
    w1, b1, w2, b2 = init_params(kp, n_feature, n_hidden, n_output)
    ref = jnp.maximum(x @ w1 + b1, 0.0) @ w2 + b2

    # 1) f32 compute path: matches the torch-equivalent reference tightly.
    mlp = PallasMLP(w1, b1, w2, b2)
    out = jax.block_until_ready(mlp(x))
    assert out.shape == (batch, n_output)
    assert jnp.allclose(out, ref, atol=1e-5, rtol=1e-5), "f32 mismatch"

    # 2) bf16 compute / f32 accumulate: halves weight HBM traffic; small
    #    documented deviation from the pure-f32 reference.
    mlp_bf16 = PallasMLP(w1, b1, w2, b2, compute_dtype=jnp.bfloat16)
    out_bf16 = jax.block_until_ready(mlp_bf16(x))
    assert jnp.allclose(out_bf16, ref, atol=5e-2, rtol=5e-2), "bf16 mismatch"

    # 3) Larger problem with an artificially small tiling budget to exercise
    #    the hidden-dim tiling (accumulator) path and a ragged batch edge.
    kx2, kp2 = jax.random.split(jax.random.PRNGKey(1))
    B2, F2, H2, O2 = 300, 200, 1000, 10
    x2 = jax.random.normal(kx2, (B2, F2), dtype=jnp.float32)
    p2 = init_params(kp2, F2, H2, O2)
    ref2 = jnp.maximum(x2 @ p2[0] + p2[1], 0.0) @ p2[2] + p2[3]
    mlp2 = PallasMLP(*p2, tiling_budget_bytes=4 * 1024 * 1024)
    out2 = jax.block_until_ready(mlp2(x2, block_m=160))
    assert out2.shape == (B2, O2)
    assert jnp.allclose(out2, ref2, atol=2e-3, rtol=2e-3), "H-tiled mismatch"

    print("KERNEL_OK")
</pallas_src>

<mosaic_0001>
module attributes {stable_mosaic.version = 11 : i64} {
  func.func @_mlp_kernel(%arg0: i32, %arg1: i32, %arg2: memref<8x16xf32, #tpu.memory_space<vmem>>, %arg3: memref<16x128xf32, #tpu.memory_space<vmem>>, %arg4: memref<1x128xf32, #tpu.memory_space<vmem>>, %arg5: memref<128x128xf32, #tpu.memory_space<vmem>>, %arg6: memref<1x128xf32, #tpu.memory_space<vmem>>, %arg7: memref<8x128xf32, #tpu.memory_space<vmem>>, %arg8: memref<8x128xf32, #tpu.memory_space<vmem>>) attributes {dimension_semantics = [#tpu.dimension_semantics<parallel>, #tpu.dimension_semantics<arbitrary>], iteration_bounds = array<i64: 1, 1>, scalar_prefetch = 0 : i64, scratch_operands = 1 : i64, tpu.core_type = #tpu.core_type<tc>, window_params = [{transform_indices = @transform_0, window_bounds = array<i64: 8, 16>}, {transform_indices = @transform_1, window_bounds = array<i64: 16, 128>}, {transform_indices = @transform_2, window_bounds = array<i64: 1, 128>}, {transform_indices = @transform_3, window_bounds = array<i64: 128, 128>}, {pipeline_mode = #tpu.pipeline_mode<synchronous>, transform_indices = @transform_4, window_bounds = array<i64: 1, 128>}, {transform_indices = @transform_5, window_bounds = array<i64: 8, 128>}]} {
    %c0_i32 = arith.constant 0 : i32
    %0 = arith.cmpi eq, %arg1, %c0_i32 : i32
    %1 = arith.extui %0 : i1 to i32
    %c0_i32_0 = arith.constant 0 : i32
    %2 = arith.cmpi ne, %1, %c0_i32_0 : i32
    scf.if %2 {
      %cst_16 = arith.constant 0.000000e+00 : f32
      %19 = vector.broadcast %cst_16 : f32 to vector<8x128xf32>
      %c0_17 = arith.constant 0 : index
      %c0_18 = arith.constant 0 : index
      %20 = vector.load %arg8[%c0_17, %c0_18] : memref<8x128xf32, #tpu.memory_space<vmem>>, vector<8x128xf32>
      tpu.vector_store %arg8[%c0_17, %c0_18], %19 {strides = array<i32>} : memref<8x128xf32, #tpu.memory_space<vmem>>, vector<8x128xf32>,
    } else {
    }
    %c0 = arith.constant 0 : index
    %c0_1 = arith.constant 0 : index
    %3 = vector.load %arg2[%c0, %c0_1] : memref<8x16xf32, #tpu.memory_space<vmem>>, vector<8x16xf32>
    %c0_2 = arith.constant 0 : index
    %c0_3 = arith.constant 0 : index
    %4 = vector.load %arg3[%c0_2, %c0_3] : memref<16x128xf32, #tpu.memory_space<vmem>>, vector<16x128xf32>
    %cst = arith.constant dense<0.000000e+00> : vector<8x128xf32>
    %5 = tpu.matmul %3, %4, %cst {dimension_numbers = #tpu.dot_dimension_numbers<[1], [0], [0], [1], [0, 0, 1, 1], [], []>} : vector<8x16xf32>, vector<16x128xf32>, vector<8x128xf32> -> vector<8x128xf32>
    %c0_4 = arith.constant 0 : index
    %c0_5 = arith.constant 0 : index
    %6 = vector.load %arg4[%c0_4, %c0_5] : memref<1x128xf32, #tpu.memory_space<vmem>>, vector<1x128xf32>
    %7 = vector.broadcast %6 : vector<1x128xf32> to vector<8x128xf32>
    %8 = arith.addf %5, %7 : vector<8x128xf32>
    %cst_6 = arith.constant 0.000000e+00 : f32
    %9 = vector.broadcast %cst_6 : f32 to vector<8x128xf32>
    %10 = arith.maximumf %8, %9 : vector<8x128xf32>
    %c0_7 = arith.constant 0 : index
    %c0_8 = arith.constant 0 : index
    %11 = vector.load %arg8[%c0_7, %c0_8] : memref<8x128xf32, #tpu.memory_space<vmem>>, vector<8x128xf32>
    %c0_9 = arith.constant 0 : index
    %c0_10 = arith.constant 0 : index
    %12 = vector.load %arg5[%c0_9, %c0_10] : memref<128x128xf32, #tpu.memory_space<vmem>>, vector<128x128xf32>
    %cst_11 = arith.constant dense<0.000000e+00> : vector<8x128xf32>
    %13 = tpu.matmul %10, %12, %cst_11 {dimension_numbers = #tpu.dot_dimension_numbers<[1], [0], [0], [1], [0, 0, 1, 1], [], []>} : vector<8x128xf32>, vector<128x128xf32>, vector<8x128xf32> -> vector<8x128xf32>
    %14 = arith.addf %11, %13 : vector<8x128xf32>
    %c0_12 = arith.constant 0 : index
    %c0_13 = arith.constant 0 : index
    %15 = vector.load %arg8[%c0_12, %c0_13] : memref<8x128xf32, #tpu.memory_space<vmem>>, vector<8x128xf32>
    tpu.vector_store %arg8[%c0_12, %c0_13], %14 {strides = array<i32>} : memref<8x128xf32, #tpu.memory_space<vmem>>, vector<8x128xf32>,
    %c0_i32_14 = arith.constant 0 : i32
    %16 = arith.cmpi eq, %arg1, %c0_i32_14 : i32
    %17 = arith.extui %16 : i1 to i32
    %c0_i32_15 = arith.constant 0 : i32
    %18 = arith.cmpi ne, %17, %c0_i32_15 : i32
    scf.if %18 {
      %c0_16 = arith.constant 0 : index
      %c0_17 = arith.constant 0 : index
      %19 = vector.load %arg8[%c0_16, %c0_17] : memref<8x128xf32, #tpu.memory_space<vmem>>, vector<8x128xf32>
      %c0_18 = arith.constant 0 : index
      %c0_19 = arith.constant 0 : index
      %20 = vector.load %arg6[%c0_18, %c0_19] : memref<1x128xf32, #tpu.memory_space<vmem>>, vector<1x128xf32>
      %21 = vector.broadcast %20 : vector<1x128xf32> to vector<8x128xf32>
      %22 = arith.addf %19, %21 : vector<8x128xf32>
      %c0_20 = arith.constant 0 : index
      %c0_21 = arith.constant 0 : index
      %23 = vector.load %arg7[%c0_20, %c0_21] : memref<8x128xf32, #tpu.memory_space<vmem>>, vector<8x128xf32>
      tpu.vector_store %arg7[%c0_20, %c0_21], %22 {strides = array<i32>} : memref<8x128xf32, #tpu.memory_space<vmem>>, vector<8x128xf32>,
    } else {
    }
    return
  }
  func.func @transform_0(%arg0: i32, %arg1: i32) -> (i32, i32) {
    %c0_i32 = arith.constant 0 : i32
    %c0_i32_0 = arith.constant 0 : i32
    return %arg0, %c0_i32 : i32, i32
  }
  func.func @transform_1(%arg0: i32, %arg1: i32) -> (i32, i32) {
    %c0_i32 = arith.constant 0 : i32
    %c0_i32_0 = arith.constant 0 : i32
    return %c0_i32, %arg1 : i32, i32
  }
  func.func @transform_2(%arg0: i32, %arg1: i32) -> (i32, i32) {
    %c0_i32 = arith.constant 0 : i32
    %c0_i32_0 = arith.constant 0 : i32
    return %c0_i32, %arg1 : i32, i32
  }
  func.func @transform_3(%arg0: i32, %arg1: i32) -> (i32, i32) {
    %c0_i32 = arith.constant 0 : i32
    %c0_i32_0 = arith.constant 0 : i32
    return %arg1, %c0_i32 : i32, i32
  }
  func.func @transform_4(%arg0: i32, %arg1: i32) -> (i32, i32) {
    %c0_i32 = arith.constant 0 : i32
    %c0_i32_0 = arith.constant 0 : i32
    %c0_i32_1 = arith.constant 0 : i32
    return %c0_i32, %c0_i32_0 : i32, i32
  }
  func.func @transform_5(%arg0: i32, %arg1: i32) -> (i32, i32) {
    %c0_i32 = arith.constant 0 : i32
    %c0_i32_0 = arith.constant 0 : i32
    return %arg0, %c0_i32 : i32, i32
  }
}

</mosaic_0001>

<llo_original>
// kernel: _mlp_forward.1
$region0: #{_mlp_forward.1}
  #allocation0 [shape = 'u32[]', space=smem, size = 0x4, offset = 0x4, fixed_abs, tag = 'smem constant byte address 0x4 - core index']
  #allocation1 [shape = 'u32[72,128]{1,0:T(1,128)}', space=vmem, size = 0x9000, scoped, tag = 'internal scratch']
  #allocation2 [shape = 'f32[8,128]{1,0:T(8,128)}', space=vmem, size = 0x1000, scoped, tag = 'scratch operand']
  %s0 = inlined_call_operand.hbm [shape: f32[8,16], index: 0, kind: input, shape index: {}]
  %s1 = inlined_call_operand.hbm [shape: f32[16,128], index: 1, kind: input, shape index: {}]
  %s2 = inlined_call_operand.vmem [shape: f32[1,128], index: 2, kind: input, shape index: {}]
  %s3 = inlined_call_operand.hbm [shape: f32[128,128], index: 3, kind: input, shape index: {}]
  %s4 = inlined_call_operand.vmem [shape: f32[1,128], index: 4, kind: input, shape index: {}]
  %s5 = inlined_call_operand.vmem [shape: f32[8,128], index: 5, kind: output, shape index: {}]
  %s6 = sld [smem:[#allocation0]]
  $region50: #{_mlp_forward.1} parent=0
    _
  %s8 = ssub.s32 1, %s6
  %s9 = scalar_select 0, %s8, %s6
  $region1: #{_mlp_forward.1} parent=0
    #allocation3 [shape = 'u8[4096]{0}', space=vmem, size = 0x1000, scoped, tag = 'input window, operand 0, single buffered']
    #allocation4 [shape = 's32[1]{0}', space=sflag, size = 0x4, scoped, tag = 'scoped memory for _mlp_forward.1']
    #allocation5 [shape = 'u8[8192]{0}', space=vmem, size = 0x2000, scoped, tag = 'input window, operand 1, single buffered']
    #allocation6 [shape = 's32[1]{0}', space=sflag, size = 0x4, scoped, tag = 'scoped memory for _mlp_forward.1']
    #allocation7 [shape = 'u8[65536]{0}', space=vmem, size = 0x10000, scoped, tag = 'input window, operand 3, single buffered']
    %10 = vsyncpa [#allocation4], 0
    %11 = vsyncpa [#allocation6], 0
    // Predicated region
    $region2: #{_mlp_forward.1} parent=1 // pred_check
      _
    $region3: #{_mlp_forward.1} parent=1 // pred_check_branch
      %13 = sbr.rel (0) target = $region5
    $region4: #{_mlp_forward.1} parent=1 // pred_region
      %15 = vsyncadd [#allocation4], 0
      %s17 = sshll.u32 %s0, 4
      %s18 = int_to_ptr.hbm [resolvable:$true] %s17
      %s19 = sshll.u32 [#allocation3], 4
      %s20 = int_to_ptr.vmem [resolvable:$true] %s19
      %22 = dma.hbm_to_vmem [thread:$0]  %s18, 128, %s20, [#allocation4]
    $region5: #{_mlp_forward.1} parent=1 // pred_fallthru
      _
    // Predicated region
    $region6: #{_mlp_forward.1} parent=1 // pred_check
      _
    $region7: #{_mlp_forward.1} parent=1 // pred_check_branch
      %24 = sbr.rel (0) target = $region9
    $region8: #{_mlp_forward.1} parent=1 // pred_region
      %26 = vsyncadd [#allocation6], 0
      %s27 = sshll.u32 %s1, 4
      %s28 = int_to_ptr.hbm [resolvable:$true] %s27
      %s29 = sshll.u32 [#allocation5], 4
      %s30 = int_to_ptr.vmem [resolvable:$true] %s29
      %35 = dma.hbm_to_vmem [thread:$0]  %s28, 256, %s30, [#allocation6], 128, 128, 8
    $region9: #{_mlp_forward.1} parent=1 // pred_fallthru
      _
    // Predicated region
    $region10: #{_mlp_forward.1} parent=1 // pred_check
      _
    $region11: #{_mlp_forward.1} parent=1 // pred_check_branch
      %37 = sbr.rel (0) target = $region13
    $region12: #{_mlp_forward.1} parent=1 // pred_region
      _
    $region13: #{_mlp_forward.1} parent=1 // pred_fallthru
      _
    // Predicated region
    $region14: #{_mlp_forward.1} parent=1 // pred_check
      _
    $region15: #{_mlp_forward.1} parent=1 // pred_check_branch
      %39 = sbr.rel (0) target = $region17
    $region16: #{_mlp_forward.1} parent=1 // pred_region
      %41 = vsyncadd [#allocation6], 0
      %s42 = sshll.u32 %s3, 4
      %s43 = int_to_ptr.hbm [resolvable:$true] %s42
      %s44 = sshll.u32 [#allocation7], 4
      %s45 = int_to_ptr.vmem [resolvable:$true] %s44
      %50 = dma.hbm_to_vmem [thread:$0]  %s43, 2048, %s45, [#allocation6], 128, 128, 8
    $region17: #{_mlp_forward.1} parent=1 // pred_fallthru
      _
    // Predicated region
    $region18: #{_mlp_forward.1} parent=1 // pred_check
      _
    $region19: #{_mlp_forward.1} parent=1 // pred_check_branch
      %52 = sbr.rel (0) target = $region21
    $region20: #{_mlp_forward.1} parent=1 // pred_region
      _
    $region21: #{_mlp_forward.1} parent=1 // pred_fallthru
      _
    // Predicated region
    $region22: #{_mlp_forward.1} parent=1 // pred_check
      _
    $region23: #{_mlp_forward.1} parent=1 // pred_check_branch
      %54 = sbr.rel (0) target = $region25
    $region24: #{_mlp_forward.1} parent=1 // pred_region
      %56 = dma.done [#allocation4], 128
    $region25: #{_mlp_forward.1} parent=1 // pred_fallthru
      _
    // Predicated region
    $region26: #{_mlp_forward.1} parent=1 // pred_check
      _
    $region27: #{_mlp_forward.1} parent=1 // pred_check_branch
      %58 = sbr.rel (0) target = $region29
    $region28: #{_mlp_forward.1} parent=1 // pred_region
      %60 = dma.done [#allocation6], 256
    $region29: #{_mlp_forward.1} parent=1 // pred_fallthru
      _
    // Predicated region
    $region30: #{_mlp_forward.1} parent=1 // pred_check
      _
    $region31: #{_mlp_forward.1} parent=1 // pred_check_branch
      %62 = sbr.rel (0) target = $region33
    $region32: #{_mlp_forward.1} parent=1 // pred_region
      %64 = dma.done [#allocation6], 2048
    $region33: #{_mlp_forward.1} parent=1 // pred_fallthru
      _
    %p65 = scmp.eq.s32.totalorder 0, 0
    // Predicated region
    $region34: #{_mlp_forward.1} parent=1 // pred_check
      %p66 = pneg %p65
    $region35: #{_mlp_forward.1} parent=1 // pred_check_branch
      %68 = sbr.rel (%p66) target = $region37
    $region36: #{_mlp_forward.1} parent=1 // pred_region
      %69 = vst [vmem:[#allocation2] sm:$0xff] 0.0
    $region37: #{_mlp_forward.1} parent=1 // pred_fallthru
      _
    %v70 = vld [vmem:[#allocation3] sm:$0xff]
    %v71 = vld [vmem:[#allocation5] sm:$0xff]
    %v72 = vld [vmem:[#allocation5 + $0x8] sm:$0xff]
    %v73 = vld [vmem:[%s2] sm:$0x1]
    %v75 = vperm.slane %v73, 0
    %vm77 = vcmask 130048
    %v79 = vsel %vm77, %v70, 0
    %81 = vmatpush.msra.mxu0 0.0
    %82 = vmatpush.msra.mxu0 0.0
    %83 = vmatpush.msra.mxu0 0.0
    %84 = vmatpush.msra.mxu0 0.0
    %85 = vmatpush.msra.mxu0 0.0
    %86 = vmatpush.msra.mxu0 0.0
    %87 = vmatpush.msra.mxu0 0.0
    %88 = vmatpush.msra.mxu0 0.0
    %89 = vmatpush.msra.mxu0 0.0
    %90 = vmatpush.msra.mxu0 0.0
    %91 = vmatpush.msra.mxu0 0.0
    %92 = vmatpush.msra.mxu0 0.0
    %93 = vmatpush.msra.mxu0 0.0
    %94 = vmatpush.msra.mxu0 0.0
    %95 = vmatpush.msra.mxu0 %v72
    %96 = vmatpush.msra.mxu0 %v71
    %97 = vmatmul.f32.gmra.mxu0 %v79
    %v98 = vpop.f32.mrf.mxu0
    %v99 = vadd.f32 %v75, %v98
    %100 = vdwg.mxu0
    %v101 = vmax.f32 %v99, 0.0
    %v102 = vld [vmem:[#allocation2] sm:$0xff]
    %v103 = vld [vmem:[#allocation7] sm:$0xff]
    %v104 = vld [vmem:[#allocation7 + $0x8] sm:$0xff]
    %v105 = vld [vmem:[#allocation7 + $0x10] sm:$0xff]
    %v106 = vld [vmem:[#allocation7 + $0x18] sm:$0xff]
    %v107 = vld [vmem:[#allocation7 + $0x20] sm:$0xff]
    %v108 = vld [vmem:[#allocation7 + $0x28] sm:$0xff]
    %v109 = vld [vmem:[#allocation7 + $0x30] sm:$0xff]
    %v110 = vld [vmem:[#allocation7 + $0x38] sm:$0xff]
    %v111 = vld [vmem:[#allocation7 + $0x40] sm:$0xff]
    %v112 = vld [vmem:[#allocation7 + $0x48] sm:$0xff]
    %v113 = vld [vmem:[#allocation7 + $0x50] sm:$0xff]
    %v114 = vld [vmem:[#allocation7 + $0x58] sm:$0xff]
    %v115 = vld [vmem:[#allocation7 + $0x60] sm:$0xff]
    %v116 = vld [vmem:[#allocation7 + $0x68] sm:$0xff]
    %v117 = vld [vmem:[#allocation7 + $0x70] sm:$0xff]
    %v118 = vld [vmem:[#allocation7 + $0x78] sm:$0xff]
    %119 = vmatpush.msra.mxu0 %v118
    %120 = vmatpush.msra.mxu0 %v117
    %121 = vmatpush.msra.mxu0 %v116
    %122 = vmatpush.msra.mxu0 %v115
    %123 = vmatpush.msra.mxu0 %v114
    %124 = vmatpush.msra.mxu0 %v113
    %125 = vmatpush.msra.mxu0 %v112
    %126 = vmatpush.msra.mxu0 %v111
    %127 = vmatpush.msra.mxu0 %v110
    %128 = vmatpush.msra.mxu0 %v109
    %129 = vmatpush.msra.mxu0 %v108
    %130 = vmatpush.msra.mxu0 %v107
    %131 = vmatpush.msra.mxu0 %v106
    %132 = vmatpush.msra.mxu0 %v105
    %133 = vmatpush.msra.mxu0 %v104
    %134 = vmatpush.msra.mxu0 %v103
    %135 = vmatmul.f32.gmra.mxu0 %v101
    %v136 = vpop.f32.mrf.mxu0
    %v137 = vadd.f32 0.0, %v136
    %138 = vdwg.mxu0
    %v139 = vadd.f32 %v102, %v137
    %140 = vst [vmem:[#allocation2] sm:$0xff] %v139
    // Predicated region
    $region38: #{_mlp_forward.1} parent=1 // pred_check
      %p141 = pneg %p65
    $region39: #{_mlp_forward.1} parent=1 // pred_check_branch
      %143 = sbr.rel (%p141) target = $region41
    $region40: #{_mlp_forward.1} parent=1 // pred_region
      %v144 = vld [vmem:[#allocation2] sm:$0xff]
      %v145 = vld [vmem:[%s4] sm:$0x1]
      %v147 = vperm.slane %v145, 0
      %v149 = vadd.f32 %v144, %v147
      %150 = vst [vmem:[%s5] sm:$0xff] %v149
    $region41: #{_mlp_forward.1} parent=1 // pred_fallthru
      _
    // Predicated region
    $region42: #{_mlp_forward.1} parent=1 // pred_check
      _
    $region43: #{_mlp_forward.1} parent=1 // pred_check_branch
      %152 = sbr.rel (0) target = $region45
    $region44: #{_mlp_forward.1} parent=1 // pred_region
      _
    $region45: #{_mlp_forward.1} parent=1 // pred_fallthru
      _
    // Predicated region
    $region46: #{_mlp_forward.1} parent=1 // pred_check
      _
    $region47: #{_mlp_forward.1} parent=1 // pred_check_branch
      %154 = sbr.rel (0) target = $region49
    $region48: #{_mlp_forward.1} parent=1 // pred_region
      _
    $region49: #{_mlp_forward.1} parent=1 // pred_fallthru
      _
    %155 = vsyncpa [#allocation4], 1
    %156 = vsyncpa [#allocation6], 1

</llo_original>
